<compile_context>
chip_gen: v7x
topology: tpu7x:2x2x1
jax: 0.10.0
libtpu: 0.0.40
codegen_flags: <defaults>
</compile_context>

<pallas_src>
import functools
import math

import jax
import jax.numpy as jnp
from jax.experimental import pallas as pl
from jax.experimental.pallas import tpu as pltpu


# ----------------------------- helpers -----------------------------

def _gelu_tanh(x):
    c = math.sqrt(2.0 / math.pi)
    return 0.5 * x * (1.0 + jnp.tanh(c * (x + 0.044715 * x * x * x)))


def _pick_tile(dim, target, align):
    """Largest tile <= target that divides dim and is align-multiple, else full dim."""
    if dim <= target:
        return dim
    t = (target // align) * align
    while t >= align:
        if dim % t == 0:
            return t
        t -= align
    return dim


# ----------------------------- tiled dense (+ optional GELU) -----------------------------

def _dense_kernel(x_ref, w_ref, b_ref, o_ref, acc_ref, *, activation):
    k = pl.program_id(2)

    @pl.when(k == 0)
    def _init():
        acc_ref[...] = jnp.zeros_like(acc_ref)

    acc_ref[...] += jnp.dot(x_ref[...], w_ref[...],
                            preferred_element_type=jnp.float32)

    @pl.when(k == pl.num_programs(2) - 1)
    def _finalize():
        y = acc_ref[...] + b_ref[...]          # bias in f32
        if activation == "gelu":
            y = _gelu_tanh(y)
        o_ref[...] = y.astype(o_ref.dtype)


def dense(x, w, b, activation=None, out_dtype=jnp.float32,
          tm=256, tn=256, tk=512):
    """x: (M, K) bf16, w: (K, N) bf16, b: (N,) f32 -> (M, N) out_dtype."""
    M, K = x.shape
    N = w.shape[1]
    tm = _pick_tile(M, tm, 8)
    tn = _pick_tile(N, tn, 128)
    tk = _pick_tile(K, tk, 128)
    grid = (M // tm, N // tn, K // tk)
    kernel = functools.partial(_dense_kernel, activation=activation)
    return pl.pallas_call(
        kernel,
        out_shape=jax.ShapeDtypeStruct((M, N), out_dtype),
        grid_spec=pltpu.PrefetchScalarGridSpec(
            num_scalar_prefetch=0,
            grid=grid,
            in_specs=[
                pl.BlockSpec((tm, tk), lambda i, j, k: (i, k)),
                pl.BlockSpec((tk, tn), lambda i, j, k: (k, j)),
                pl.BlockSpec((1, tn), lambda i, j, k: (0, j)),
            ],
            out_specs=pl.BlockSpec((tm, tn), lambda i, j, k: (i, j)),
            scratch_shapes=[pltpu.VMEM((tm, tn), jnp.float32)],
        ),
        compiler_params=pltpu.CompilerParams(
            dimension_semantics=("parallel", "parallel", "arbitrary")),
    )(x, w, b.reshape(1, N))


# ----------------------------- tiled dense + residual + LayerNorm -----------------------------

def _dense_ln_kernel(x_ref, w_ref, b_ref, r_ref, g_ref, bb_ref, o_ref, acc_ref,
                     *, eps):
    k = pl.program_id(1)

    @pl.when(k == 0)
    def _init():
        acc_ref[...] = jnp.zeros_like(acc_ref)

    acc_ref[...] += jnp.dot(x_ref[...], w_ref[...],
                            preferred_element_type=jnp.float32)

    @pl.when(k == pl.num_programs(1) - 1)
    def _finalize():
        y = acc_ref[...] + b_ref[...] + r_ref[...]       # bias + residual (f32)
        mean = jnp.mean(y, axis=-1, keepdims=True)
        yc = y - mean
        var = jnp.mean(yc * yc, axis=-1, keepdims=True)
        inv = jax.lax.rsqrt(var + eps)
        o_ref[...] = (yc * inv * g_ref[...] + bb_ref[...]).astype(o_ref.dtype)


def dense_ln_residual(x, w, b, residual, gamma, beta, eps=1e-12, tm=256, tk=512):
    """LayerNorm(x @ w + b + residual). N (=H) kept as one lane-dense block."""
    M, K = x.shape
    N = w.shape[1]
    tm = _pick_tile(M, tm, 8)
    tk = _pick_tile(K, tk, 128)
    grid = (M // tm, K // tk)
    kernel = functools.partial(_dense_ln_kernel, eps=eps)
    return pl.pallas_call(
        kernel,
        out_shape=jax.ShapeDtypeStruct((M, N), jnp.float32),
        grid_spec=pltpu.PrefetchScalarGridSpec(
            num_scalar_prefetch=0,
            grid=grid,
            in_specs=[
                pl.BlockSpec((tm, tk), lambda i, k: (i, k)),
                pl.BlockSpec((tk, N), lambda i, k: (k, 0)),
                pl.BlockSpec((1, N), lambda i, k: (0, 0)),
                pl.BlockSpec((tm, N), lambda i, k: (i, 0)),
                pl.BlockSpec((1, N), lambda i, k: (0, 0)),
                pl.BlockSpec((1, N), lambda i, k: (0, 0)),
            ],
            out_specs=pl.BlockSpec((tm, N), lambda i, k: (i, 0)),
            scratch_shapes=[pltpu.VMEM((tm, N), jnp.float32)],
        ),
        compiler_params=pltpu.CompilerParams(
            dimension_semantics=("parallel", "arbitrary")),
    )(x, w, b.reshape(1, N), residual, gamma.reshape(1, N), beta.reshape(1, N))


# ----------------------------- attention -----------------------------

def _attention_kernel(q_ref, k_ref, v_ref, o_ref, *, num_heads, head_dim, scale):
    # refs are (1, S, H) bf16: one batch per grid step, heads packed along H.
    for h in range(num_heads):
        sl = slice(h * head_dim, (h + 1) * head_dim)
        qh = q_ref[0, :, sl] * scale                     # fold scale into q (bf16)
        kh = k_ref[0, :, sl]
        vh = v_ref[0, :, sl]
        # scores = qh @ kh.T on the MXU, f32 accumulation.
        scores = jax.lax.dot_general(
            qh, kh, (((1,), (1,)), ((), ())),
            preferred_element_type=jnp.float32)          # (S, S)
        m = jnp.max(scores, axis=-1, keepdims=True)
        p = jnp.exp(scores - m)
        denom = jnp.sum(p, axis=-1, keepdims=True)
        p = p * pl.reciprocal(denom, approx=True)        # EUP reciprocal
        ctx_h = jnp.dot(p.astype(vh.dtype), vh,
                        preferred_element_type=jnp.float32)   # (S, hd)
        o_ref[0, :, sl] = ctx_h.astype(o_ref.dtype)


def attention(q, k, v, num_heads):
    """q, k, v: (B, S, H) bf16, heads packed along H -> context (B, S, H) bf16."""
    B, S, H = q.shape
    hd = H // num_heads
    scale = 1.0 / math.sqrt(hd)
    kernel = functools.partial(_attention_kernel, num_heads=num_heads,
                               head_dim=hd, scale=scale)
    spec = pl.BlockSpec((1, S, H), lambda b: (b, 0, 0))
    return pl.pallas_call(
        kernel,
        out_shape=jax.ShapeDtypeStruct((B, S, H), jnp.bfloat16),
        grid=(B,),
        in_specs=[spec, spec, spec],
        out_specs=spec,
        compiler_params=pltpu.CompilerParams(dimension_semantics=("parallel",)),
    )(q, k, v)


# ----------------------------- BERT layer / encoder -----------------------------

def bert_layer(hidden_states, p, num_heads):
    """One BertLayer: self-attn + add&norm + FFN + add&norm."""
    B, S, H = hidden_states.shape
    x = hidden_states.reshape(B * S, H)                  # f32 residual
    x_bf16 = x.astype(jnp.bfloat16)

    # Fused Q/K/V projection: one (H, 3H) matmul instead of three.
    qkv = dense(x_bf16, p["qkv_w"], p["qkv_b"], out_dtype=jnp.bfloat16)
    qkv = qkv.reshape(B, S, 3 * H)
    q, k, v = jnp.split(qkv, 3, axis=-1)                 # (B, S, H) each, no head transpose

    ctx = attention(q, k, v, num_heads=num_heads)        # (B, S, H) bf16
    ctx = ctx.reshape(B * S, H)

    # Attention output dense fused with residual-add + LayerNorm.
    h1 = dense_ln_residual(ctx, p["ao_w"], p["ao_b"], x, p["ln1_g"], p["ln1_b"])

    # Feed-forward: intermediate (GELU fused) + output dense fused with add&norm.
    inter = dense(h1.astype(jnp.bfloat16), p["i_w"], p["i_b"],
                  activation="gelu", out_dtype=jnp.bfloat16)
    h2 = dense_ln_residual(inter, p["o_w"], p["o_b"], h1, p["ln2_g"], p["ln2_b"])

    return h2.reshape(B, S, H)


def bert_encoder(hidden_states, layer_params, num_heads):
    # attention_mask / head_mask / encoder_hidden_states / past_key_values = None,
    # use_cache / output_attentions / output_hidden_states = False -> only
    # last_hidden_state is produced (matches the reference forward in that mode).
    for p in layer_params:
        hidden_states = bert_layer(hidden_states, p, num_heads)
    return hidden_states


# ----------------------------- parameter init -----------------------------

def init_layer_params(key, hidden_size, intermediate_size):
    ks = jax.random.split(key, 6)
    std = 0.02
    H, I = hidden_size, intermediate_size
    q_w = jax.random.normal(ks[0], (H, H), jnp.float32) * std
    k_w = jax.random.normal(ks[1], (H, H), jnp.float32) * std
    v_w = jax.random.normal(ks[2], (H, H), jnp.float32) * std
    return {
        # fused QKV weight (H, 3H), stored bf16 for the MXU
        "qkv_w": jnp.concatenate([q_w, k_w, v_w], axis=1).astype(jnp.bfloat16),
        "qkv_b": jnp.zeros((3 * H,), jnp.float32),
        "ao_w": (jax.random.normal(ks[3], (H, H), jnp.float32) * std).astype(jnp.bfloat16),
        "ao_b": jnp.zeros((H,), jnp.float32),
        "ln1_g": jnp.ones((H,), jnp.float32),
        "ln1_b": jnp.zeros((H,), jnp.float32),
        "i_w": (jax.random.normal(ks[4], (H, I), jnp.float32) * std).astype(jnp.bfloat16),
        "i_b": jnp.zeros((I,), jnp.float32),
        "o_w": (jax.random.normal(ks[5], (I, H), jnp.float32) * std).astype(jnp.bfloat16),
        "o_b": jnp.zeros((H,), jnp.float32),
        "ln2_g": jnp.ones((H,), jnp.float32),
        "ln2_b": jnp.zeros((H,), jnp.float32),
    }


# ----------------------------- main -----------------------------

if __name__ == "__main__":
    # Small config consistent with BertEncoder's forward semantics.
    batch = 2
    seq = 8
    hidden_size = 32
    num_heads = 4
    intermediate_size = 64
    num_hidden_layers = 2

    key = jax.random.PRNGKey(0)
    k_in, *k_layers = jax.random.split(key, num_hidden_layers + 1)

    hidden_states = jax.random.normal(k_in, (batch, seq, hidden_size), jnp.float32)
    layer_params = [
        init_layer_params(k_layers[i], hidden_size, intermediate_size)
        for i in range(num_hidden_layers)
    ]

    out = bert_encoder(hidden_states, layer_params, num_heads)
    out = jax.block_until_ready(out)
    assert out.shape == (batch, seq, hidden_size)
    assert jnp.all(jnp.isfinite(out))
    print("KERNEL_OK")
</pallas_src>

<mosaic_0001>
module attributes {stable_mosaic.version = 11 : i64} {
  func.func @_dense_kernel(%arg0: i32, %arg1: i32, %arg2: i32, %arg3: memref<16x32xbf16, #tpu.memory_space<vmem>>, %arg4: memref<32x96xbf16, #tpu.memory_space<vmem>>, %arg5: memref<1x96xf32, #tpu.memory_space<vmem>>, %arg6: memref<16x96xbf16, #tpu.memory_space<vmem>>, %arg7: memref<16x96xf32, #tpu.memory_space<vmem>>) attributes {dimension_semantics = [#tpu.dimension_semantics<parallel>, #tpu.dimension_semantics<parallel>, #tpu.dimension_semantics<arbitrary>], iteration_bounds = array<i64: 1, 1, 1>, scalar_prefetch = 0 : i64, scratch_operands = 1 : i64, tpu.core_type = #tpu.core_type<tc>, window_params = [{transform_indices = @transform_0, window_bounds = array<i64: 16, 32>}, {transform_indices = @transform_1, window_bounds = array<i64: 32, 96>}, {transform_indices = @transform_2, window_bounds = array<i64: 1, 96>}, {transform_indices = @transform_3, window_bounds = array<i64: 16, 96>}]} {
    %c0_i32 = arith.constant 0 : i32
    %0 = arith.cmpi eq, %arg2, %c0_i32 : i32
    %1 = arith.extui %0 : i1 to i32
    %c0_i32_0 = arith.constant 0 : i32
    %2 = arith.cmpi ne, %1, %c0_i32_0 : i32
    scf.if %2 {
      %cst_10 = arith.constant 0.000000e+00 : f32
      %12 = vector.broadcast %cst_10 : f32 to vector<16x96xf32>
      %c0_11 = arith.constant 0 : index
      %c0_12 = arith.constant 0 : index
      %13 = vector.load %arg7[%c0_11, %c0_12] : memref<16x96xf32, #tpu.memory_space<vmem>>, vector<16x96xf32>
      tpu.vector_store %arg7[%c0_11, %c0_12], %12 {strides = array<i32>} : memref<16x96xf32, #tpu.memory_space<vmem>>, vector<16x96xf32>,
    } else {
    }
    %c0 = arith.constant 0 : index
    %c0_1 = arith.constant 0 : index
    %3 = vector.load %arg7[%c0, %c0_1] : memref<16x96xf32, #tpu.memory_space<vmem>>, vector<16x96xf32>
    %c0_2 = arith.constant 0 : index
    %c0_3 = arith.constant 0 : index
    %4 = vector.load %arg3[%c0_2, %c0_3] : memref<16x32xbf16, #tpu.memory_space<vmem>>, vector<16x32xbf16>
    %c0_4 = arith.constant 0 : index
    %c0_5 = arith.constant 0 : index
    %5 = vector.load %arg4[%c0_4, %c0_5] : memref<32x96xbf16, #tpu.memory_space<vmem>>, vector<32x96xbf16>
    %cst = arith.constant dense<0.000000e+00> : vector<16x96xf32>
    %6 = tpu.matmul %4, %5, %cst {dimension_numbers = #tpu.dot_dimension_numbers<[1], [0], [0], [1], [0, 0, 1, 1], [], []>} : vector<16x32xbf16>, vector<32x96xbf16>, vector<16x96xf32> -> vector<16x96xf32>
    %7 = arith.addf %3, %6 : vector<16x96xf32>
    %c0_6 = arith.constant 0 : index
    %c0_7 = arith.constant 0 : index
    %8 = vector.load %arg7[%c0_6, %c0_7] : memref<16x96xf32, #tpu.memory_space<vmem>>, vector<16x96xf32>
    tpu.vector_store %arg7[%c0_6, %c0_7], %7 {strides = array<i32>} : memref<16x96xf32, #tpu.memory_space<vmem>>, vector<16x96xf32>,
    %c0_i32_8 = arith.constant 0 : i32
    %9 = arith.cmpi eq, %arg2, %c0_i32_8 : i32
    %10 = arith.extui %9 : i1 to i32
    %c0_i32_9 = arith.constant 0 : i32
    %11 = arith.cmpi ne, %10, %c0_i32_9 : i32
    scf.if %11 {
      %c0_10 = arith.constant 0 : index
      %c0_11 = arith.constant 0 : index
      %12 = vector.load %arg7[%c0_10, %c0_11] : memref<16x96xf32, #tpu.memory_space<vmem>>, vector<16x96xf32>
      %c0_12 = arith.constant 0 : index
      %c0_13 = arith.constant 0 : index
      %13 = vector.load %arg5[%c0_12, %c0_13] : memref<1x96xf32, #tpu.memory_space<vmem>>, vector<1x96xf32>
      %14 = vector.broadcast %13 : vector<1x96xf32> to vector<16x96xf32>
      %15 = arith.addf %12, %14 : vector<16x96xf32>
      %16 = arith.truncf %15 : vector<16x96xf32> to vector<16x96xbf16>
      %c0_14 = arith.constant 0 : index
      %c0_15 = arith.constant 0 : index
      %17 = vector.load %arg6[%c0_14, %c0_15] : memref<16x96xbf16, #tpu.memory_space<vmem>>, vector<16x96xbf16>
      tpu.vector_store %arg6[%c0_14, %c0_15], %16 {strides = array<i32>} : memref<16x96xbf16, #tpu.memory_space<vmem>>, vector<16x96xbf16>,
    } else {
    }
    return
  }
  func.func @transform_0(%arg0: i32, %arg1: i32, %arg2: i32) -> (i32, i32) {
    %c0_i32 = arith.constant 0 : i32
    return %arg0, %arg2 : i32, i32
  }
  func.func @transform_1(%arg0: i32, %arg1: i32, %arg2: i32) -> (i32, i32) {
    %c0_i32 = arith.constant 0 : i32
    return %arg2, %arg1 : i32, i32
  }
  func.func @transform_2(%arg0: i32, %arg1: i32, %arg2: i32) -> (i32, i32) {
    %c0_i32 = arith.constant 0 : i32
    %c0_i32_0 = arith.constant 0 : i32
    return %c0_i32, %arg1 : i32, i32
  }
  func.func @transform_3(%arg0: i32, %arg1: i32, %arg2: i32) -> (i32, i32) {
    %c0_i32 = arith.constant 0 : i32
    return %arg0, %arg1 : i32, i32
  }
}

</mosaic_0001>

<llo_original>
// kernel: tpu_custom_call.1
$region0: #{tpu_custom_call.1}
  #allocation0 [shape = 'u32[]', space=smem, size = 0x4, offset = 0x4, fixed_abs, tag = 'smem constant byte address 0x4 - core index']
  #allocation1 [shape = 'u32[144,128]{1,0:T(1,128)}', space=vmem, size = 0x12000, scoped, tag = 'internal scratch']
  #allocation2 [shape = 'f32[16,96]{1,0:T(8,128)}', space=vmem, size = 0x2000, scoped, tag = 'scratch operand']
  %s0 = inlined_call_operand.hbm [shape: bf16[16,32], index: 0, kind: input, shape index: {}]
  %s1 = inlined_call_operand.hbm [shape: bf16[32,96], index: 1, kind: input, shape index: {}]
  %s2 = inlined_call_operand.vmem [shape: f32[1,96], index: 2, kind: input, shape index: {}]
  %s3 = inlined_call_operand.hbm [shape: bf16[16,96], index: 3, kind: output, shape index: {}]
  %s4 = sld [smem:[#allocation0]]
  $region38: #{tpu_custom_call.1} parent=0
    _
  %s6 = ssub.s32 1, %s4
  %s7 = scalar_select 0, %s6, %s4
  $region1: #{tpu_custom_call.1} parent=0
    #allocation3 [shape = 'u8[4096]{0}', space=vmem, size = 0x1000, scoped, tag = 'input window, operand 0, single buffered']
    #allocation4 [shape = 's32[1]{0}', space=sflag, size = 0x4, scoped, tag = 'scoped memory for tpu_custom_call.1']
    #allocation5 [shape = 's32[1]{0}', space=sflag, size = 0x4, scoped, tag = 'scoped memory for tpu_custom_call.1']
    #allocation6 [shape = 'u8[8192]{0}', space=vmem, size = 0x2000, scoped, tag = 'input window, operand 1, single buffered']
    #allocation7 [shape = 's32[1]{0}', space=sflag, size = 0x4, scoped, tag = 'scoped memory for tpu_custom_call.1']
    #allocation8 [shape = 'u8[4096]{0}', space=vmem, size = 0x1000, scoped, tag = 'output window, operand 0, single buffered']
    %8 = vsyncpa [#allocation4], 0
    %9 = vsyncpa [#allocation7], 0
    %10 = vsyncpa [#allocation5], 0
    // Predicated region
    $region2: #{tpu_custom_call.1} parent=1 // pred_check
      _
    $region3: #{tpu_custom_call.1} parent=1 // pred_check_branch
      %12 = sbr.rel (0) target = $region5
    $region4: #{tpu_custom_call.1} parent=1 // pred_region
      %s14 = ssub.s32 128, 128
      %15 = vsyncadd [#allocation4], %s14
      %s16 = sshll.u32 [#allocation3], 4
      %s17 = int_to_ptr.vmem [resolvable:$true] %s16
      %22 = dma.hbm_to_vmem [thread:$0]  %s0, 128, %s17, [#allocation4], 64, 64, 4
    $region5: #{tpu_custom_call.1} parent=1 // pred_fallthru
      _
    // Predicated region
    $region6: #{tpu_custom_call.1} parent=1 // pred_check
      _
    $region7: #{tpu_custom_call.1} parent=1 // pred_check_branch
      %24 = sbr.rel (0) target = $region9
    $region8: #{tpu_custom_call.1} parent=1 // pred_region
      %s26 = ssub.s32 256, 256
      %27 = vsyncadd [#allocation7], %s26
      %s28 = sshll.u32 [#allocation6], 4
      %s29 = int_to_ptr.vmem [resolvable:$true] %s28
      %34 = dma.hbm_to_vmem [thread:$0]  %s1, 256, %s29, [#allocation7], 64, 64, 4
    $region9: #{tpu_custom_call.1} parent=1 // pred_fallthru
      _
    // Predicated region
    $region10: #{tpu_custom_call.1} parent=1 // pred_check
      _
    $region11: #{tpu_custom_call.1} parent=1 // pred_check_branch
      %36 = sbr.rel (0) target = $region13
    $region12: #{tpu_custom_call.1} parent=1 // pred_region
      _
    $region13: #{tpu_custom_call.1} parent=1 // pred_fallthru
      _
    // Predicated region
    $region14: #{tpu_custom_call.1} parent=1 // pred_check
      _
    $region15: #{tpu_custom_call.1} parent=1 // pred_check_branch
      %38 = sbr.rel (0) target = $region17
    $region16: #{tpu_custom_call.1} parent=1 // pred_region
      %39 = dma.done [#allocation4], 128
    $region17: #{tpu_custom_call.1} parent=1 // pred_fallthru
      _
    // Predicated region
    $region18: #{tpu_custom_call.1} parent=1 // pred_check
      _
    $region19: #{tpu_custom_call.1} parent=1 // pred_check_branch
      %41 = sbr.rel (0) target = $region21
    $region20: #{tpu_custom_call.1} parent=1 // pred_region
      %42 = dma.done [#allocation7], 256
    $region21: #{tpu_custom_call.1} parent=1 // pred_fallthru
      _
    %p44 = scmp.eq.s32.totalorder 0, 0
    // Predicated region
    $region22: #{tpu_custom_call.1} parent=1 // pred_check
      %p45 = pneg %p44
    $region23: #{tpu_custom_call.1} parent=1 // pred_check_branch
      %47 = sbr.rel (%p45) target = $region25
    $region24: #{tpu_custom_call.1} parent=1 // pred_region
      %vm48 = vcmask 785408
      %49 = vst.msk [vmem:[#allocation2] sm:$0xff] %vm48, 0.0
      %50 = vst.msk [vmem:[#allocation2 + $0x8] sm:$0xff] %vm48, 0.0
    $region25: #{tpu_custom_call.1} parent=1 // pred_fallthru
      _
    %v51 = vld [vmem:[#allocation2] sm:$0xff]
    %v52 = vld [vmem:[#allocation2 + $0x8] sm:$0xff]
    %v53 = vld [vmem:[#allocation3] sm:$0xf]
    %v54 = vld [vmem:[#allocation3 + $0x4] sm:$0xf]
    %v55 = vld [vmem:[#allocation6] sm:$0xf]
    %v56 = vld [vmem:[#allocation6 + $0x4] sm:$0xf]
    %v57 = vld [vmem:[#allocation6 + $0x8] sm:$0xf]
    %v58 = vld [vmem:[#allocation6 + $0xc] sm:$0xf]
    %v61 = vunpack.c.l.b16 %v53
    %v62 = vunpack.c.l.b16 %v54
    %v63 = vpack.c.b16 %v62, %v61
    %v68 = vunpack.c.l.b16 %v55
    %v69 = vunpack.c.l.b16 %v56
    %v70 = vunpack.c.l.b16 %v57
    %v71 = vunpack.c.l.b16 %v58
    %v72 = vpack.c.b16 %v69, %v68
    %v73 = vpack.c.b16 %v71, %v70
    %vm76 = vcmask 261120
    %v78 = vsel %vm76, %v63, 0
    %80 = vmatprep.subr.bf16.mxu0 0
    %81 = vmatpush1.bf16.msra.mxu0 %v72
    %82 = vmatprep.subr.bf16.mxu0 0
    %83 = vmatpush1.bf16.msra.mxu0 %v73
    %84 = vmatprep.subr.bf16.mxu0 0
    %85 = vmatpush1.bf16.msra.mxu0 0
    %86 = vmatprep.subr.bf16.mxu0 0
    %87 = vmatpush1.bf16.msra.mxu0 0
    %88 = vmatprep.subr.bf16.mxu0 0
    %89 = vmatpush1.bf16.msra.mxu0 0
    %90 = vmatprep.subr.bf16.mxu0 0
    %91 = vmatpush1.bf16.msra.mxu0 0
    %92 = vmatprep.subr.bf16.mxu0 0
    %93 = vmatpush1.bf16.msra.mxu0 0
    %94 = vmatprep.subr.bf16.mxu0 0
    %95 = vmatpush1.bf16.msra.mxu0 0
    %96 = vmatprep.subr.bf16.mxu0 0
    %97 = vmatpush1.bf16.msra.mxu0 0
    %98 = vmatprep.subr.bf16.mxu0 0
    %99 = vmatpush1.bf16.msra.mxu0 0
    %100 = vmatprep.subr.bf16.mxu0 0
    %101 = vmatpush1.bf16.msra.mxu0 0
    %102 = vmatprep.subr.bf16.mxu0 0
    %103 = vmatpush1.bf16.msra.mxu0 0
    %104 = vmatprep.subr.bf16.mxu0 0
    %105 = vmatpush1.bf16.msra.mxu0 0
    %106 = vmatprep.subr.bf16.mxu0 0
    %107 = vmatpush1.bf16.msra.mxu0 0
    %108 = vmatprep.subr.bf16.mxu0 0
    %109 = vmatpush1.bf16.msra.mxu0 0
    %110 = vmatprep.subr.bf16.mxu0 0
    %111 = vmatpush1.bf16.msra.mxu0 0
    %112 = vmatprep.mubr.bf16.mxu0 0
    %113 = vmatmul.mubr.bf16.gmra.mrb[0].mxu0 %v78
    %v114 = vpop.f32.mrb[0].mxu0
    %v115 = vadd.f32 0.0, %v114
    %v116 = vpop.f32.mrb[0].mxu0
    %v117 = vpop.f32.mrb[0].mxu0
    %v118 = vadd.f32 0.0, %v117
    %v119 = vpop.f32.mrb[0].mxu0
    %120 = vdwg.mxu0
    %v121 = vadd.f32 %v51, %v115
    %v122 = vadd.f32 %v52, %v118
    %vm123 = vcmask 785408
    %124 = vst.msk [vmem:[#allocation2] sm:$0xff] %vm123, %v121
    %125 = vst.msk [vmem:[#allocation2 + $0x8] sm:$0xff] %vm123, %v122
    // Predicated region
    $region26: #{tpu_custom_call.1} parent=1 // pred_check
      %p126 = pneg %p44
    $region27: #{tpu_custom_call.1} parent=1 // pred_check_branch
      %128 = sbr.rel (%p126) target = $region29
    $region28: #{tpu_custom_call.1} parent=1 // pred_region
      %v129 = vld [vmem:[#allocation2] sm:$0xff]
      %v130 = vld [vmem:[#allocation2 + $0x8] sm:$0xff]
      %v131 = vld [vmem:[%s2] sm:$0x1]
      %v133 = vlaneseq
      %v134 = vshrl.u32 %v133, 7
      %v135 = vsub.s32 0, %v134
      %v136 = vrot.slane %v131, %v135
      %v138 = vadd.f32 %v129, %v136
      %v139 = vadd.f32 %v130, %v136
      %v140 = vpack.c.bf16 %v139, %v138
      %v142 = vunpack.c.l.b16 %v140
      %v143 = vunpack.c.h.b16 %v140
      %v144 = vpack.c.b16 %v142, %v142
      %v145 = vpack.c.b16 %v143, %v143
      %vm148 = vcmask 781312
      %149 = vst.msk [vmem:[#allocation8] sm:$0xf] %vm148, %v144
      %150 = vst.msk [vmem:[#allocation8 + $0x4] sm:$0xf] %vm148, %v145
    $region29: #{tpu_custom_call.1} parent=1 // pred_fallthru
      _
    // Predicated region
    $region30: #{tpu_custom_call.1} parent=1 // pred_check
      _
    $region31: #{tpu_custom_call.1} parent=1 // pred_check_branch
      %152 = sbr.rel (0) target = $region33
    $region32: #{tpu_custom_call.1} parent=1 // pred_region
      %s154 = ssub.s32 128, 128
      %155 = vsyncadd [#allocation5], %s154
      %s156 = sshll.u32 [#allocation8], 4
      %s157 = int_to_ptr.vmem [resolvable:$true] %s156
      %162 = dma.vmem_to_hbm [thread:$0]  %s157, 128, %s3, [#allocation5], 64, 64, 4
    $region33: #{tpu_custom_call.1} parent=1 // pred_fallthru
      _
    // Predicated region
    $region34: #{tpu_custom_call.1} parent=1 // pred_check
      _
    $region35: #{tpu_custom_call.1} parent=1 // pred_check_branch
      %164 = sbr.rel (0) target = $region37
    $region36: #{tpu_custom_call.1} parent=1 // pred_region
      %165 = dma.done [#allocation5], 128
    $region37: #{tpu_custom_call.1} parent=1 // pred_fallthru
      _
    %166 = vsyncpa [#allocation4], 1
    %167 = vsyncpa [#allocation7], 1
    %168 = vsyncpa [#allocation5], 1

</llo_original>
